<compile_context>
chip_gen: v7x
topology: tpu7x:2x2x1
jax: 0.10.0
libtpu: 0.0.40
codegen_flags: <defaults>
</compile_context>

<pallas_src>
import functools

import jax
import jax.numpy as jnp
from jax.experimental import pallas as pl
from jax.experimental.pallas import tpu as pltpu


def _round_up(x, m):
    return ((x + m - 1) // m) * m


def _vmem_capacity_bytes():
    """Best-effort per-core VMEM capacity; conservative fallback (v7x = 64 MiB)."""
    try:
        info = pltpu.get_tpu_info()
        cap = getattr(info, "vmem_capacity_bytes", None)
        if cap:
            return int(cap)
    except Exception:
        pass
    return 64 * 1024 * 1024


def _cep_kernel(n_rows, tile_r, mask_rows, mask_cols, d1_ref, d2_ref, o_ref):
    """One row tile: write its (replicated) partial of -sum d1 * log(d2 + 1e-5)."""
    d1 = d1_ref[...].astype(jnp.float32)
    d2 = d2_ref[...].astype(jnp.float32)
    # NOTE(v7x): log kept in f32 to match the reference's .float() numerics.
    # If a bundle dump ever shows the single EUP saturating ahead of HBM on
    # v7x with bf16 inputs, switch the log to bf16 (EUP bf16 exists on
    # v6e/v7x) and keep the multiply/accumulate in f32.
    term = d1 * jnp.log(d2 + jnp.float32(1e-5))

    if mask_cols:
        # Reference inner loop runs j < n_rows only.  Small (1, col_blk) mask
        # broadcast inside the where -- no full-tile int32/bool temporaries.
        col = jax.lax.broadcasted_iota(jnp.int32, (1, term.shape[1]), 1)
        term = jnp.where(col < n_rows, term, jnp.float32(0.0))
    if mask_rows:
        # Padded last row tile: drop rows >= n_rows (padded data is
        # unspecified and may be NaN under log; where selects it away).
        row = pl.program_id(0) * tile_r + jax.lax.broadcasted_iota(
            jnp.int32, (term.shape[0], 1), 0)
        term = jnp.where(row < n_rows, term, jnp.float32(0.0))

    # Negation folded in; each grid step writes an independent partial
    # (lane-dense (1,1,128) block), so the row axis is truly "parallel".
    partial = -jnp.sum(term)
    o_ref[...] = jnp.broadcast_to(partial, o_ref.shape)


def cep_loss(distribution1, distribution2):
    """Pallas implementation of CEPLoss.forward. Returns shape (1,) float32."""
    d1 = jnp.squeeze(jnp.asarray(distribution1))
    d2 = jnp.squeeze(jnp.asarray(distribution2))
    assert d1.shape == d2.shape
    assert d1.ndim == 2, "reference indexes d[i][j]; expect 2D after squeeze"
    n_rows, n_cols = d1.shape
    # Reference sums j < len(d1) == n_rows, so it implicitly requires
    # n_cols >= n_rows (PyTorch would index out of bounds otherwise).
    assert n_cols >= n_rows, "reference requires at least n_rows columns"

    # Only the first n_rows columns contribute: trim the DMA window to a
    # lane-aligned extent (multiple of 128) or the full width if narrower.
    col_blk = min(n_cols, _round_up(n_rows, 128))
    mask_cols = col_blk > n_rows

    itemsize1 = jnp.dtype(d1.dtype).itemsize
    itemsize2 = jnp.dtype(d2.dtype).itemsize
    # Native sublane packing of the narrowest streamed dtype:
    # f32 -> 8, bf16 -> 16, int8/fp8 -> 32.
    pack = max(8, 32 // max(1, min(itemsize1, itemsize2)))

    # Generation-aware budget: ~1/4 of VMEM on the streaming window
    # (v5e/v6e: 128 MiB -> 32 MiB, v7x: 64 MiB -> 16 MiB).
    vmem_cap = _vmem_capacity_bytes()
    budget = vmem_cap // 4

    # Per-row footprint: double-buffered native-dtype inputs (both arrays)
    # plus in-kernel f32 intermediates (f32 d1, f32 d2, term ~= 12 B/elem,
    # +4 B/elem slack for scheduling temporaries).
    dma_per_row = col_blk * (itemsize1 + itemsize2)
    compute_per_row = col_blk * 16
    per_row = 2 * dma_per_row + compute_per_row

    tile_r = max(pack, (budget // per_row) // pack * pack)
    tile_r = min(tile_r, _round_up(n_rows, pack))
    # v7x has 2 TensorCores: guarantee >= 2 steps on the "parallel" axis
    # whenever the shape allows it so both cores pull HBM bandwidth.
    if pl.cdiv(n_rows, tile_r) < 2 and n_rows > pack:
        tile_r = _round_up(pl.cdiv(n_rows, 2), pack)
    grid_r = pl.cdiv(n_rows, tile_r)
    mask_rows = (n_rows % tile_r) != 0

    kernel = functools.partial(_cep_kernel, n_rows, tile_r, mask_rows, mask_cols)

    # vmem_limit: real per-step footprint (inputs + intermediates) with 2x
    # headroom, floored at 16 MiB, capped below physical VMEM.
    tile_bytes = tile_r * per_row
    vmem_limit = int(min(vmem_cap * 3 // 4,
                         max(2 * tile_bytes, 16 * 1024 * 1024)))

    compiler_params = pltpu.CompilerParams(
        dimension_semantics=("parallel",),  # independent row tiles (2 TCs on v7x)
        vmem_limit_bytes=vmem_limit,
    )

    partials = pl.pallas_call(
        kernel,
        out_shape=jax.ShapeDtypeStruct((grid_r, 1, 128), jnp.float32),
        grid_spec=pltpu.PrefetchScalarGridSpec(
            num_scalar_prefetch=0,
            grid=(grid_r,),
            in_specs=[
                pl.BlockSpec((tile_r, col_blk), lambda i: (i, 0)),
                pl.BlockSpec((tile_r, col_blk), lambda i: (i, 0)),
            ],
            out_specs=pl.BlockSpec((1, 1, 128), lambda i: (i, 0, 0)),
        ),
        compiler_params=compiler_params,
    )(d1, d2)

    loss = jnp.sum(partials[:, 0, 0])
    return loss.reshape((1,))


def _cep_loss_ref(d1, d2):
    """Pure-JAX reference mirroring the PyTorch loop semantics."""
    d1 = jnp.squeeze(jnp.asarray(d1, jnp.float32))
    d2 = jnp.squeeze(jnp.asarray(d2, jnp.float32))
    n = d1.shape[0]
    term = d1[:, :n] * jnp.log(d2[:, :n] + 1e-5)
    return (-jnp.sum(term)).reshape((1,))


def _make_dists(key, shape, dtype=jnp.float32):
    k1, k2 = jax.random.split(key)
    l1 = jax.random.uniform(k1, shape, jnp.float32) + 0.1
    l2 = jax.random.uniform(k2, shape, jnp.float32) + 0.1
    d1 = (l1 / jnp.sum(l1, axis=-1, keepdims=True)).astype(dtype)
    d2 = (l2 / jnp.sum(l2, axis=-1, keepdims=True)).astype(dtype)
    return d1, d2


if __name__ == "__main__":
    key = jax.random.PRNGKey(0)
    keys = jax.random.split(key, 4)

    # Primary case consistent with the forward: (1, 16, 16) squeezes to (16, 16).
    d1, d2 = _make_dists(keys[0], (1, 16, 16))
    out = cep_loss(d1, d2)
    jax.block_until_ready(out)
    ref = _cep_loss_ref(d1, d2)
    assert out.shape == (1,)
    assert jnp.allclose(out, ref, rtol=1e-5, atol=1e-5), (out, ref)

    # Wide (non-square) case: exercises the trimmed column window + column mask.
    d1, d2 = _make_dists(keys[1], (1, 24, 40))
    out = cep_loss(d1, d2)
    jax.block_until_ready(out)
    ref = _cep_loss_ref(d1, d2)
    assert jnp.allclose(out, ref, rtol=1e-5, atol=1e-5), (out, ref)

    # Rows not a multiple of the tile: exercises the padded last tile + row mask,
    # and a non-lane-aligned (20-wide) block.
    d1, d2 = _make_dists(keys[2], (1, 20, 20))
    out = cep_loss(d1, d2)
    jax.block_until_ready(out)
    ref = _cep_loss_ref(d1, d2)
    assert jnp.allclose(out, ref, rtol=1e-5, atol=1e-5), (out, ref)

    # Native bf16 inputs: streamed as bf16 (pack=16 rows), cast to f32 in VMEM.
    d1, d2 = _make_dists(keys[3], (1, 32, 32), dtype=jnp.bfloat16)
    out = cep_loss(d1, d2)
    jax.block_until_ready(out)
    ref = _cep_loss_ref(d1, d2)
    assert jnp.allclose(out, ref, rtol=1e-4, atol=1e-4), (out, ref)

    print("KERNEL_OK")
</pallas_src>

<mosaic_0001>
module attributes {stable_mosaic.version = 11 : i64} {
  func.func @_cep_kernel(%arg0: i32, %arg1: memref<8x16xf32, #tpu.memory_space<vmem>>, %arg2: memref<8x16xf32, #tpu.memory_space<vmem>>, %arg3: memref<1x1x128xf32, #tpu.memory_space<vmem>>) attributes {dimension_semantics = [#tpu.dimension_semantics<parallel>], iteration_bounds = array<i64: 2>, scalar_prefetch = 0 : i64, scratch_operands = 0 : i64, tpu.core_type = #tpu.core_type<tc>, window_params = [{transform_indices = @transform_0, window_bounds = array<i64: 8, 16>}, {transform_indices = @transform_1, window_bounds = array<i64: 8, 16>}, {transform_indices = @transform_2, window_bounds = array<i64: 1, 1, 128>}]} {
    %c0 = arith.constant 0 : index
    %c0_0 = arith.constant 0 : index
    %0 = vector.load %arg1[%c0, %c0_0] : memref<8x16xf32, #tpu.memory_space<vmem>>, vector<8x16xf32>
    %c0_1 = arith.constant 0 : index
    %c0_2 = arith.constant 0 : index
    %1 = vector.load %arg2[%c0_1, %c0_2] : memref<8x16xf32, #tpu.memory_space<vmem>>, vector<8x16xf32>
    %cst = arith.constant 9.99999974E-6 : f32
    %2 = vector.broadcast %cst : f32 to vector<8x16xf32>
    %3 = arith.addf %1, %2 : vector<8x16xf32>
    %4 = math.log %3 : vector<8x16xf32>
    %5 = arith.mulf %0, %4 : vector<8x16xf32>
    %6 = vector.shape_cast %5 : vector<8x16xf32> to vector<1x8x16xf32>
    %cst_3 = arith.constant dense<0.000000e+00> : vector<1xf32>
    %7 = vector.multi_reduction <add>, %6, %cst_3 [1, 2] : vector<1x8x16xf32> to vector<1xf32>
    %8 = vector.shape_cast %7 : vector<1xf32> to vector<1x1x1xf32>
    %9 = vector.extract %8[0, 0, 0] : f32 from vector<1x1x1xf32>
    %cst_4 = arith.constant 0.000000e+00 : f32
    %10 = arith.subf %cst_4, %9 : f32
    %11 = vector.broadcast %10 : f32 to vector<1x1x128xf32>
    %c0_5 = arith.constant 0 : index
    %c0_6 = arith.constant 0 : index
    %c0_7 = arith.constant 0 : index
    %12 = vector.load %arg3[%c0_5, %c0_6, %c0_7] : memref<1x1x128xf32, #tpu.memory_space<vmem>>, vector<1x1x128xf32>
    tpu.vector_store %arg3[%c0_5, %c0_6, %c0_7], %11 {strides = array<i32>} : memref<1x1x128xf32, #tpu.memory_space<vmem>>, vector<1x1x128xf32>,
    return
  }
  func.func @transform_0(%arg0: i32) -> (i32, i32) {
    %c0_i32 = arith.constant 0 : i32
    %c0_i32_0 = arith.constant 0 : i32
    return %arg0, %c0_i32 : i32, i32
  }
  func.func @transform_1(%arg0: i32) -> (i32, i32) {
    %c0_i32 = arith.constant 0 : i32
    %c0_i32_0 = arith.constant 0 : i32
    return %arg0, %c0_i32 : i32, i32
  }
  func.func @transform_2(%arg0: i32) -> (i32, i32, i32) {
    %c0_i32 = arith.constant 0 : i32
    %c0_i32_0 = arith.constant 0 : i32
    %c0_i32_1 = arith.constant 0 : i32
    return %arg0, %c0_i32, %c0_i32_0 : i32, i32, i32
  }
}

</mosaic_0001>

<llo_original>
// kernel: tpu_custom_call.1
$region0: #{tpu_custom_call.1}
  #allocation0 [shape = 'u32[]', space=smem, size = 0x4, offset = 0x4, fixed_abs, tag = 'smem constant byte address 0x4 - core index']
  #allocation1 [shape = 'u32[144,128]{1,0:T(1,128)}', space=vmem, size = 0x12000, scoped, tag = 'internal scratch']
  %s0 = inlined_call_operand.hbm [shape: f32[16,16], index: 0, kind: input, shape index: {}]
  %s1 = inlined_call_operand.hbm [shape: f32[16,16], index: 1, kind: input, shape index: {}]
  %s2 = inlined_call_operand.hbm [shape: f32[2,1,128], index: 2, kind: output, shape index: {}]
  %s3 = sld [smem:[#allocation0]]
  $region49: #{tpu_custom_call.1} parent=0
    _
  %s5 = ssub.s32 1, %s3
  %s6 = scalar_select 0, %s5, %s3
  $region1: #{tpu_custom_call.1} parent=0
    #allocation2 [shape = 'u8[8192]{0}', space=vmem, size = 0x2000, scoped, tag = 'input window, operand 0']
    #allocation3 [shape = 's32[2]{0}', space=sflag, size = 0x8, scoped, tag = 'scoped memory for tpu_custom_call.1']
    #allocation4 [shape = 's32[2]{0}', space=sflag, size = 0x8, scoped, tag = 'scoped memory for tpu_custom_call.1']
    #allocation5 [shape = 'u8[8192]{0}', space=vmem, size = 0x2000, scoped, tag = 'input window, operand 1']
    #allocation6 [shape = 's32[2]{0}', space=sflag, size = 0x8, scoped, tag = 'scoped memory for tpu_custom_call.1']
    #allocation7 [shape = 'u8[1024]{0}', space=vmem, size = 0x400, scoped, tag = 'output window, operand 0']
    %7 = vsyncpa [#allocation3], 0
    %s8 = scalar_lea.sflag [#allocation3], 1
    %9 = vsyncpa %s8, 0
    %10 = vsyncpa [#allocation6], 0
    %s11 = scalar_lea.sflag [#allocation6], 1
    %12 = vsyncpa %s11, 0
    %13 = vsyncpa [#allocation4], 0
    %s14 = scalar_lea.sflag [#allocation4], 1
    %15 = vsyncpa %s14, 0
    loop: start=0, step=1, limit=4
    $region2: #{tpu_custom_call.1} parent=1 // loop_pre_header
      _
    $region3: #{tpu_custom_call.1} parent=1 // loop_header
      %s17 = sphi 0, %s21
      %p18 = scmp.ge.s32.totalorder %s17, 4
      %s27 = sphi 0, %s29
      %s30 = sphi 0, %s27
      %s31 = sphi 0, %s30
      %s47 = sphi 0, %s31
      %s53 = sphi 0, %s55
      %s56 = sphi 0, %s53
      %s57 = sphi 0, %s56
      %s73 = sphi 0, %s57
      %s79 = sphi 0, %s81
      %s82 = sphi 0, %s79
      %s83 = sphi 0, %s82
      %s99 = sphi 0, %s83
    $region4: #{tpu_custom_call.1} parent=1 // loop_header_branch
      %20 = sbr.rel (%p18) target = $region8
    $region5: #{tpu_custom_call.1} parent=1 // loop_body
      %s22 = ssub.s32 %s17, 1
      %s23 = ssub.s32 %s17, 2
      %s24 = sadd.s32 %s17, 1
      %s25 = ssub.s32 %s17, %s24
      %p26 = scmp.eq.s32.totalorder %s25, 0
      %s28 = sadd.s32 %s27, 1
      %s29 = scalar_select %p26, %s27, %s28
      %p32 = pneg %p26
      %p33 = scmp.eq.s32.totalorder %s17, 1
      %p34 = por %p32, %p33
      %p35 = scmp.ne.s32.totalorder %s27, %s30
      %p36 = scmp.eq.s32.totalorder %s17, 0
      %p37 = por %p35, %p36
      %p38 = scmp.ne.s32.totalorder %s27, %s30
      %p39 = scmp.eq.s32.totalorder %s22, 1
      %p40 = por %p38, %p39
      %p41 = scmp.ne.s32.totalorder %s30, %s31
      %p42 = scmp.eq.s32.totalorder %s22, 0
      %p43 = por %p41, %p42
      %p44 = scmp.ne.s32.totalorder %s30, %s31
      %p45 = scmp.eq.s32.totalorder %s23, 1
      %p46 = por %p44, %p45
      %p48 = scmp.ne.s32.totalorder %s31, %s47
      %p49 = scmp.eq.s32.totalorder %s23, 0
      %p50 = por %p48, %p49
      %s51 = ssub.s32 %s17, %s24
      %p52 = scmp.eq.s32.totalorder %s51, 0
      %s54 = sadd.s32 %s53, 1
      %s55 = scalar_select %p52, %s53, %s54
      %p58 = pneg %p52
      %p59 = scmp.eq.s32.totalorder %s17, 1
      %p60 = por %p58, %p59
      %p61 = scmp.ne.s32.totalorder %s53, %s56
      %p62 = scmp.eq.s32.totalorder %s17, 0
      %p63 = por %p61, %p62
      %p64 = scmp.ne.s32.totalorder %s53, %s56
      %p65 = scmp.eq.s32.totalorder %s22, 1
      %p66 = por %p64, %p65
      %p67 = scmp.ne.s32.totalorder %s56, %s57
      %p68 = scmp.eq.s32.totalorder %s22, 0
      %p69 = por %p67, %p68
      %p70 = scmp.ne.s32.totalorder %s56, %s57
      %p71 = scmp.eq.s32.totalorder %s23, 1
      %p72 = por %p70, %p71
      %p74 = scmp.ne.s32.totalorder %s57, %s73
      %p75 = scmp.eq.s32.totalorder %s23, 0
      %p76 = por %p74, %p75
      %s77 = ssub.s32 %s17, %s24
      %p78 = scmp.eq.s32.totalorder %s77, 0
      %s80 = sadd.s32 %s79, 1
      %s81 = scalar_select %p78, %s79, %s80
      %p84 = pneg %p78
      %p85 = scmp.eq.s32.totalorder %s17, 1
      %p86 = por %p84, %p85
      %p87 = scmp.ne.s32.totalorder %s79, %s82
      %p88 = scmp.eq.s32.totalorder %s17, 0
      %p89 = por %p87, %p88
      %p90 = scmp.ne.s32.totalorder %s79, %s82
      %p91 = scmp.eq.s32.totalorder %s22, 1
      %p92 = por %p90, %p91
      %p93 = scmp.ne.s32.totalorder %s82, %s83
      %p94 = scmp.eq.s32.totalorder %s22, 0
      %p95 = por %p93, %p94
      %p96 = scmp.ne.s32.totalorder %s82, %s83
      %p97 = scmp.eq.s32.totalorder %s23, 1
      %p98 = por %p96, %p97
      %p100 = scmp.ne.s32.totalorder %s83, %s99
      %p101 = scmp.eq.s32.totalorder %s23, 0
      %p102 = por %p100, %p101
      %p103 = scmp.le.s32.totalorder 1, %s17
      %p104 = scmp.lt.s32.totalorder %s17, 3
      %p105 = pnand %p103, %p104
      %p106 = pneg %p105
      // Predicated region
      $region9: #{tpu_custom_call.1} parent=5 // pred_check
        _
      $region10: #{tpu_custom_call.1} parent=5 // pred_check_branch
        %108 = sbr.rel (%p105) target = $region12
      $region11: #{tpu_custom_call.1} parent=5 // pred_region
        %s109 = ssub.s32 %s17, 1
      $region12: #{tpu_custom_call.1} parent=5 // pred_fallthru
        _
      %p110 = scmp.lt.s32.totalorder %s17, 2
      // Predicated region
      $region13: #{tpu_custom_call.1} parent=5 // pred_check
        %p111 = pneg %p110
      $region14: #{tpu_custom_call.1} parent=5 // pred_check_branch
        %113 = sbr.rel (%p111) target = $region16
      $region15: #{tpu_custom_call.1} parent=5 // pred_region
        // Predicated region
        $region17: #{tpu_custom_call.1} parent=15 // pred_check
          %p114 = pneg %p37
        $region18: #{tpu_custom_call.1} parent=15 // pred_check_branch
          %116 = sbr.rel (%p114) target = $region20
        $region19: #{tpu_custom_call.1} parent=15 // pred_region
          %s117 = sand.u32 %s27, 1
          %s118 = scalar_lea.sflag [#allocation3], %s117
          %s119 = sand.u32 %s27, 1
          %s120 = smul.addr %s119, 8
          %s121 = scalar_lea.vmem [#allocation2], %s120
          %s123 = ssub.s32 128, 128
          %124 = vsyncadd %s118, %s123
          %s125 = smul.addr %s17, 128
          %s126 = scalar_lea.hbm %s0, %s125
          %s128 = sshll.u32 %s121, 4
          %s129 = int_to_ptr.vmem [resolvable:$true] %s128
          %131 = dma.hbm_to_vmem [thread:$0]  %s126, 128, %s129, %s118
        $region20: #{tpu_custom_call.1} parent=15 // pred_fallthru
          _
        // Predicated region
        $region21: #{tpu_custom_call.1} parent=15 // pred_check
          %p132 = pneg %p63
        $region22: #{tpu_custom_call.1} parent=15 // pred_check_branch
          %134 = sbr.rel (%p132) target = $region24
        $region23: #{tpu_custom_call.1} parent=15 // pred_region
          %s135 = sand.u32 %s53, 1
          %s136 = scalar_lea.sflag [#allocation6], %s135
          %s137 = sand.u32 %s53, 1
          %s138 = smul.addr %s137, 8
          %s139 = scalar_lea.vmem [#allocation5], %s138
          %s141 = ssub.s32 128, 128
          %142 = vsyncadd %s136, %s141
          %s143 = smul.addr %s17, 128
          %s144 = scalar_lea.hbm %s1, %s143
          %s146 = sshll.u32 %s139, 4
          %s147 = int_to_ptr.vmem [resolvable:$true] %s146
          %149 = dma.hbm_to_vmem [thread:$0]  %s144, 128, %s147, %s136
        $region24: #{tpu_custom_call.1} parent=15 // pred_fallthru
          _
      $region16: #{tpu_custom_call.1} parent=5 // pred_fallthru
        _
      %p150 = scmp.le.s32.totalorder 1, %s17
      %p151 = scmp.lt.s32.totalorder %s17, 3
      %p152 = pnand %p150, %p151
      %p153 = pneg %p152
      // Predicated region
      $region25: #{tpu_custom_call.1} parent=5 // pred_check
        _
      $region26: #{tpu_custom_call.1} parent=5 // pred_check_branch
        %155 = sbr.rel (%p152) target = $region28
      $region27: #{tpu_custom_call.1} parent=5 // pred_region
        %s156 = ssub.s32 %s17, 1
        %s157 = sand.u32 %s30, 1
        %s158 = scalar_lea.sflag [#allocation3], %s157
        %s159 = sand.u32 %s30, 1
        %s160 = smul.addr %s159, 8
        %s161 = scalar_lea.vmem [#allocation2], %s160
        // Predicated region
        $region29: #{tpu_custom_call.1} parent=27 // pred_check
          %p162 = pneg %p43
        $region30: #{tpu_custom_call.1} parent=27 // pred_check_branch
          %164 = sbr.rel (%p162) target = $region32
        $region31: #{tpu_custom_call.1} parent=27 // pred_region
          %165 = dma.done %s158, 128
        $region32: #{tpu_custom_call.1} parent=27 // pred_fallthru
          _
        %s166 = sand.u32 %s56, 1
        %s167 = scalar_lea.sflag [#allocation6], %s166
        %s168 = sand.u32 %s56, 1
        %s169 = smul.addr %s168, 8
        %s170 = scalar_lea.vmem [#allocation5], %s169
        // Predicated region
        $region33: #{tpu_custom_call.1} parent=27 // pred_check
          %p171 = pneg %p69
        $region34: #{tpu_custom_call.1} parent=27 // pred_check_branch
          %173 = sbr.rel (%p171) target = $region36
        $region35: #{tpu_custom_call.1} parent=27 // pred_region
          %174 = dma.done %s167, 128
        $region36: #{tpu_custom_call.1} parent=27 // pred_fallthru
          _
        %s175 = sand.u32 %s30, 1
        %s176 = scalar_lea.sflag [#allocation3], %s175
        %s177 = sand.u32 %s30, 1
        %s178 = smul.addr %s177, 8
        %s179 = scalar_lea.vmem [#allocation2], %s178
        %p180 = pneg %p43
        %p181 = pneg %p40
        %s182 = sand.u32 %s56, 1
        %s183 = scalar_lea.sflag [#allocation6], %s182
        %s184 = sand.u32 %s56, 1
        %s185 = smul.addr %s184, 8
        %s186 = scalar_lea.vmem [#allocation5], %s185
        %p187 = pneg %p69
        %p188 = pneg %p66
        %p189 = pneg %p95
        %p190 = pneg %p92
        %s191 = sand.u32 %s82, 1
        %s192 = scalar_lea.sflag [#allocation4], %s191
        %s193 = sand.u32 %s82, 1
        %s194 = scalar_lea.vmem [#allocation7], %s193
        %v195 = vld [vmem:[%s161] sm:$0xff]
        %v196 = vld [vmem:[%s170] sm:$0xff]
        %v197 = vadd.f32 %v196, 1e-05
        %v198 = vlog2.pop %v197
        %v199 = vmul.f32 %v198, 0.6931472
        %v200 = vmul.f32 %v195, %v199
        %vm201 = vcmask 130048
        %v202 = vsel %vm201, %v200, 0.0
        %203 = vadd.xlane.f32.xlu0 %v202
        %v204 = vpop.xlane.xlu0 %203
        %v205 = vrot.slane %v204, 4
        %v206 = vadd.f32 %v204, %v205
        %v207 = vrot.slane %v206, 2
        %v208 = vadd.f32 %v206, %v207
        %v209 = vrot.slane %v208, 1
        %v210 = vadd.f32 %v208, %v209
        %s211 = vtos %v210
        %s212 = ssub.f32 0.0, %s211
        %v213 = vstv %s212
        %214 = vst [vmem:[%s194] sm:$0x1] %v213
        %s215 = sand.u32 %s82, 1
        %s216 = scalar_lea.sflag [#allocation4], %s215
        %s217 = sand.u32 %s82, 1
        %s218 = scalar_lea.vmem [#allocation7], %s217
        // Predicated region
        $region37: #{tpu_custom_call.1} parent=27 // pred_check
          %p219 = pneg %p92
        $region38: #{tpu_custom_call.1} parent=27 // pred_check_branch
          %221 = sbr.rel (%p219) target = $region40
        $region39: #{tpu_custom_call.1} parent=27 // pred_region
          %s223 = ssub.s32 16, 16
          %224 = vsyncadd %s216, %s223
          %s225 = smul.addr %s22, 16
          %s226 = scalar_lea.hbm %s2, %s225
          %s228 = sshll.u32 %s218, 4
          %s229 = int_to_ptr.vmem [resolvable:$true] %s228
          %231 = dma.vmem_to_hbm [thread:$0]  %s229, 16, %s226, %s216
        $region40: #{tpu_custom_call.1} parent=27 // pred_fallthru
          _
      $region28: #{tpu_custom_call.1} parent=5 // pred_fallthru
        _
      %p232 = scmp.le.s32.totalorder 2, %s17
      // Predicated region
      $region41: #{tpu_custom_call.1} parent=5 // pred_check
        %p233 = pneg %p232
      $region42: #{tpu_custom_call.1} parent=5 // pred_check_branch
        %235 = sbr.rel (%p233) target = $region44
      $region43: #{tpu_custom_call.1} parent=5 // pred_region
        %s236 = ssub.s32 %s17, 2
        // Predicated region
        $region45: #{tpu_custom_call.1} parent=43 // pred_check
          %p237 = pneg %p98
        $region46: #{tpu_custom_call.1} parent=43 // pred_check_branch
          %239 = sbr.rel (%p237) target = $region48
        $region47: #{tpu_custom_call.1} parent=43 // pred_region
          %s240 = sand.u32 %s83, 1
          %s241 = scalar_lea.sflag [#allocation4], %s240
          %s242 = sand.u32 %s83, 1
          %s243 = scalar_lea.vmem [#allocation7], %s242
          %244 = dma.done %s241, 16
        $region48: #{tpu_custom_call.1} parent=43 // pred_fallthru
          _
      $region44: #{tpu_custom_call.1} parent=5 // pred_fallthru
        _
    $region6: #{tpu_custom_call.1} parent=1 // loop_footer
      %s21 = sadd.s32 1, %s17
    $region7: #{tpu_custom_call.1} parent=1 // loop_footer_branch
      %16 = sbr.rel target = $region3
    $region8: #{tpu_custom_call.1} parent=1 // loop_exit
      _
    %245 = vsyncpa [#allocation3], 1
    %s246 = scalar_lea.sflag [#allocation3], 1
    %247 = vsyncpa %s246, 1
    %248 = vsyncpa [#allocation6], 1
    %s249 = scalar_lea.sflag [#allocation6], 1
    %250 = vsyncpa %s249, 1
    %251 = vsyncpa [#allocation4], 1
    %s252 = scalar_lea.sflag [#allocation4], 1
    %253 = vsyncpa %s252, 1

</llo_original>
